<compile_context>
chip_gen: v6e
topology: v6e:2x2x1
jax: 0.10.0
libtpu: 0.0.40
codegen_flags: <defaults>
</compile_context>

<pallas_src>
import functools

import jax
import jax.numpy as jnp
from jax.experimental import pallas as pl
from jax.experimental.pallas import tpu as pltpu


def _round_up(x, m):
    return ((x + m - 1) // m) * m


def _apply_activation(h, activation):
    if activation == "relu":
        return jnp.maximum(h, 0.0)
    if activation == "tanh":
        return jnp.tanh(h)                 # EUP transcendental
    if activation == "leaky":
        return jnp.where(h > 0, h, 0.01 * h)
    raise ValueError(f"unsupported activation: {activation}")


def _mlp_kernel_fused(x_ref, w1_ref, b1_ref, w2_ref, b2_ref, o_ref, *, activation):
    """1-D grid over batch tiles; both weight matrices VMEM-resident."""
    # fc1: (TB, In) @ (In, H) -> (TB, H), f32 accumulation on the MXU.
    h = jnp.dot(x_ref[...], w1_ref[...], preferred_element_type=jnp.float32)
    h = _apply_activation(h + b1_ref[...], activation)
    # fc2: (TB, H) @ (H, OutP) -> (TB, OutP). Single downcast point if bf16.
    y = jnp.dot(h.astype(w2_ref.dtype), w2_ref[...],
                preferred_element_type=jnp.float32)
    o_ref[...] = (y + b2_ref[...]).astype(o_ref.dtype)


def _mlp_kernel_ntiled(x_ref, w1_ref, b1_ref, w2_ref, b2_ref, o_ref, h_ref,
                       *, activation):
    """2-D grid (batch tiles, fc2-output stripes).

    fc1 is computed once per batch tile (j == 0) and cached in VMEM scratch;
    every j step consumes one (H, TN) stripe of w2.
    """
    @pl.when(pl.program_id(1) == 0)
    def _():
        h = jnp.dot(x_ref[...], w1_ref[...], preferred_element_type=jnp.float32)
        h_ref[...] = _apply_activation(h + b1_ref[...], activation)

    y = jnp.dot(h_ref[...].astype(w2_ref.dtype), w2_ref[...],
                preferred_element_type=jnp.float32)
    o_ref[...] = (y + b2_ref[...]).astype(o_ref.dtype)


def _vmem_config():
    """(budget_bytes, limit_bytes) per TPU generation, with safe fallback."""
    cap = 128 * 1024 * 1024
    try:
        info = pltpu.get_tpu_info()
        cap = int(getattr(info, "vmem_capacity_bytes", cap) or cap)
    except Exception:
        pass
    if cap <= 64 * 1024 * 1024:                     # v7x: 64 MiB / TensorCore
        return 42 * 1024 * 1024, 56 * 1024 * 1024
    return 96 * 1024 * 1024, 108 * 1024 * 1024      # v5e / v6e: 128 MiB


def mlp_forward(x, w1, b1, w2, b2, *, activation="relu",
                block_batch=1024, block_out=None,
                matmul_dtype=jnp.bfloat16,
                vmem_budget_bytes=None, vmem_limit_bytes=None):
    """Fused MLP forward (eval mode / dropout=0.0).

    x:  (B, In)
    w1: (H, In),  b1: (H,)     -- PyTorch nn.Linear layout (transposed once here)
    w2: (Out, H), b2: (Out,)

    matmul_dtype: dtype of MXU operands (bf16 default: native MXU rate on
    v5e/v6e/v7x, halves weight/activation DMA). Pass None for exact f32.
    """
    B, In = x.shape
    H = w1.shape[0]
    Out = w2.shape[0]
    out_dtype = x.dtype

    budget, limit = _vmem_config()
    if vmem_budget_bytes is not None:
        budget = vmem_budget_bytes
    if vmem_limit_bytes is not None:
        limit = vmem_limit_bytes

    if matmul_dtype is not None:
        x = x.astype(matmul_dtype)
        w1 = w1.astype(matmul_dtype)
        w2 = w2.astype(matmul_dtype)

    # One-time HBM-side transposes -> standard (M,K)x(K,N) feed in the kernel.
    w1_t = w1.T                                   # (In, H)
    w2_t = w2.T                                   # (H, Out)
    b1 = b1.astype(jnp.float32).reshape(1, H)     # bias/activation stay f32
    b2 = b2.astype(jnp.float32)

    in_item = jnp.dtype(x.dtype).itemsize
    w_item = jnp.dtype(w1_t.dtype).itemsize
    out_item = jnp.dtype(out_dtype).itemsize

    # Lane-dense output: pad Out up to a multiple of 128 (unmasked vst's).
    out_p = max(128, _round_up(Out, 128))

    # bf16 packs 2 rows per sublane (int8/fp8: 4) -> round the batch tile to it.
    row_mult = {4: 8, 2: 16, 1: 32}.get(in_item, 8)

    def footprint(tb, tn):
        # Pallas double-buffers EVERY BlockSpec (even constant-index weights).
        bufs = 2
        tiles = bufs * tb * (In * in_item + tn * out_item)
        weights = bufs * ((In * H + H * tn) * w_item + (H + tn) * 4)
        interm = tb * (H + tn) * 4        # f32 h (scratch / vregs) + f32 y
        return tiles + weights + interm

    # fc2-output tile: full width when resident weights fit the budget,
    # otherwise a 128-multiple stripe (bounds w2 VMEM, e.g. v7x's 64 MiB).
    if block_out is not None:
        tn = min(out_p, max(128, _round_up(block_out, 128)))
    else:
        tn = out_p
        while tn > 128 and footprint(row_mult, tn) > budget:
            tn = max(128, (tn // 2 // 128) * 128)
    out_p = _round_up(out_p, tn)

    # Batch tile: as large as the VMEM budget allows (multiple of row_mult).
    tb = max(row_mult,
             (min(block_batch, _round_up(B, row_mult)) // row_mult) * row_mult)
    while tb > row_mult and footprint(tb, tn) > budget:
        tb = max(row_mult, (tb // 2 // row_mult) * row_mult)
    # Keep >= 2 batch grid steps so v7x's second TensorCore gets work.
    if _round_up(B, tb) // tb < 2 and tb > row_mult:
        tb = max(row_mult, (tb // 2 // row_mult) * row_mult)

    # Pad batch / output so the grid divides evenly (no edge-block masking).
    b_p = _round_up(B, tb)
    if b_p != B:
        x = jnp.pad(x, ((0, b_p - B), (0, 0)))
    if out_p != Out:
        w2_t = jnp.pad(w2_t, ((0, 0), (0, out_p - Out)))
        b2 = jnp.pad(b2, (0, out_p - Out))
    b2 = b2.reshape(1, out_p)

    cost = pl.CostEstimate(
        flops=2 * b_p * (In * H + H * out_p),
        transcendentals=(b_p * H if activation == "tanh" else 0),
        bytes_accessed=(b_p * In * in_item
                        + (In * H + H * out_p) * w_item
                        + b_p * out_p * out_item))

    if tn == out_p:
        # Fully fused path: 1-D grid over batch, weights VMEM-resident.
        grid = (b_p // tb,)
        kernel = functools.partial(_mlp_kernel_fused, activation=activation)
        in_specs = [
            pl.BlockSpec((tb, In), lambda i: (i, 0)),       # x: batch-tiled
            pl.BlockSpec((In, H), lambda i: (0, 0)),        # w1 (resident)
            pl.BlockSpec((1, H), lambda i: (0, 0)),         # b1
            pl.BlockSpec((H, out_p), lambda i: (0, 0)),     # w2 (resident)
            pl.BlockSpec((1, out_p), lambda i: (0, 0)),     # b2
        ]
        out_specs = pl.BlockSpec((tb, out_p), lambda i: (i, 0))
        scratch_shapes = []
        dim_sem = ("parallel",)
    else:
        # fc2-output-tiled path: 2-D grid, w2 streamed in stripes, h cached.
        grid = (b_p // tb, out_p // tn)
        kernel = functools.partial(_mlp_kernel_ntiled, activation=activation)
        in_specs = [
            pl.BlockSpec((tb, In), lambda i, j: (i, 0)),    # x: batch-tiled
            pl.BlockSpec((In, H), lambda i, j: (0, 0)),     # w1 (resident)
            pl.BlockSpec((1, H), lambda i, j: (0, 0)),      # b1
            pl.BlockSpec((H, tn), lambda i, j: (0, j)),     # w2 stripe
            pl.BlockSpec((1, tn), lambda i, j: (0, j)),     # b2 stripe
        ]
        out_specs = pl.BlockSpec((tb, tn), lambda i, j: (i, j))
        scratch_shapes = [pltpu.VMEM((tb, H), jnp.float32)]  # cached fc1 output
        dim_sem = ("parallel", "arbitrary")

    out = pl.pallas_call(
        kernel,
        out_shape=jax.ShapeDtypeStruct((b_p, out_p), out_dtype),
        grid_spec=pltpu.PrefetchScalarGridSpec(
            num_scalar_prefetch=0,
            grid=grid,
            in_specs=in_specs,
            out_specs=out_specs,
            scratch_shapes=scratch_shapes),
        compiler_params=pltpu.CompilerParams(
            dimension_semantics=dim_sem,          # batch axis -> megacore
            vmem_limit_bytes=limit),
        cost_estimate=cost,
    )(x, w1_t, b1, w2_t, b2)

    return out[:B, :Out]


if __name__ == "__main__":
    # TODO(synk): train-mode dropout is not implemented; it is a no-op for
    # dropout=0.0 / eval(), which is the forward semantics implemented here.
    batch, input_size, hidden_size, output_size = 256, 32, 64, 16

    key = jax.random.PRNGKey(0)
    kx, k1, k2, k3, k4 = jax.random.split(key, 5)

    x = jax.random.normal(kx, (batch, input_size), dtype=jnp.float32)
    bound1 = 1.0 / (input_size ** 0.5)
    w1 = jax.random.uniform(k1, (hidden_size, input_size),
                            minval=-bound1, maxval=bound1, dtype=jnp.float32)
    b1 = jax.random.uniform(k2, (hidden_size,),
                            minval=-bound1, maxval=bound1, dtype=jnp.float32)
    bound2 = 1.0 / (hidden_size ** 0.5)
    w2 = jax.random.uniform(k3, (output_size, hidden_size),
                            minval=-bound2, maxval=bound2, dtype=jnp.float32)
    b2 = jax.random.uniform(k4, (output_size,),
                            minval=-bound2, maxval=bound2, dtype=jnp.float32)

    ref = jnp.maximum(x @ w1.T + b1, 0.0) @ w2.T + b2

    # 1) exact f32 path.
    fwd_f32 = jax.jit(functools.partial(mlp_forward, activation="relu",
                                        matmul_dtype=None))
    out_f32 = fwd_f32(x, w1, b1, w2, b2)
    jax.block_until_ready(out_f32)
    assert out_f32.shape == (batch, output_size)
    assert jnp.allclose(out_f32, ref, atol=1e-5, rtol=1e-5), "f32 mismatch vs reference"

    # 2) default bf16 matmul-operand path (native MXU rate), loose tolerance.
    fwd_bf16 = jax.jit(mlp_forward)
    out_bf16 = fwd_bf16(x, w1, b1, w2, b2)
    jax.block_until_ready(out_bf16)
    assert jnp.allclose(out_bf16, ref, atol=5e-2, rtol=5e-2), "bf16 mismatch vs reference"

    # 3) fc2-output-tiled path (the 2-D grid used when weights do not fit VMEM,
    #    e.g. large layers on v7x): Out=256, block_out=128 -> grid (2, 2).
    out2 = 256
    k5, k6 = jax.random.split(k4)
    w2b = jax.random.uniform(k5, (out2, hidden_size),
                             minval=-bound2, maxval=bound2, dtype=jnp.float32)
    b2b = jax.random.uniform(k6, (out2,),
                             minval=-bound2, maxval=bound2, dtype=jnp.float32)
    ref_tanh = jnp.tanh(x @ w1.T + b1) @ w2b.T + b2b
    fwd_tiled = jax.jit(functools.partial(mlp_forward, activation="tanh",
                                          matmul_dtype=None,
                                          block_out=128, block_batch=128))
    out_tiled = fwd_tiled(x, w1, b1, w2b, b2b)
    jax.block_until_ready(out_tiled)
    assert out_tiled.shape == (batch, out2)
    assert jnp.allclose(out_tiled, ref_tanh, atol=1e-3, rtol=1e-3), "tiled-path mismatch"

    print("KERNEL_OK")
</pallas_src>

<mosaic_0001>
module attributes {stable_mosaic.version = 11 : i64} {
  func.func @_mlp_kernel_fused(%arg0: i32, %arg1: memref<128x32xf32, #tpu.memory_space<vmem>>, %arg2: memref<32x64xf32, #tpu.memory_space<vmem>>, %arg3: memref<1x64xf32, #tpu.memory_space<vmem>>, %arg4: memref<64x128xf32, #tpu.memory_space<vmem>>, %arg5: memref<1x128xf32, #tpu.memory_space<vmem>>, %arg6: memref<128x128xf32, #tpu.memory_space<vmem>>) attributes {dimension_semantics = [#tpu.dimension_semantics<parallel>], iteration_bounds = array<i64: 2>, scalar_prefetch = 0 : i64, scratch_operands = 0 : i64, tpu.core_type = #tpu.core_type<tc>, window_params = [{transform_indices = @transform_0, window_bounds = array<i64: 128, 32>}, {pipeline_mode = #tpu.pipeline_mode<synchronous>, transform_indices = @transform_1, window_bounds = array<i64: 32, 64>}, {pipeline_mode = #tpu.pipeline_mode<synchronous>, transform_indices = @transform_2, window_bounds = array<i64: 1, 64>}, {pipeline_mode = #tpu.pipeline_mode<synchronous>, transform_indices = @transform_3, window_bounds = array<i64: 64, 128>}, {pipeline_mode = #tpu.pipeline_mode<synchronous>, transform_indices = @transform_4, window_bounds = array<i64: 1, 128>}, {transform_indices = @transform_5, window_bounds = array<i64: 128, 128>}]} {
    %c0 = arith.constant 0 : index
    %c0_0 = arith.constant 0 : index
    %0 = vector.load %arg1[%c0, %c0_0] : memref<128x32xf32, #tpu.memory_space<vmem>>, vector<128x32xf32>
    %c0_1 = arith.constant 0 : index
    %c0_2 = arith.constant 0 : index
    %1 = vector.load %arg2[%c0_1, %c0_2] : memref<32x64xf32, #tpu.memory_space<vmem>>, vector<32x64xf32>
    %cst = arith.constant dense<0.000000e+00> : vector<128x64xf32>
    %2 = tpu.matmul %0, %1, %cst {dimension_numbers = #tpu.dot_dimension_numbers<[1], [0], [0], [1], [0, 0, 1, 1], [], []>} : vector<128x32xf32>, vector<32x64xf32>, vector<128x64xf32> -> vector<128x64xf32>
    %c0_3 = arith.constant 0 : index
    %c0_4 = arith.constant 0 : index
    %3 = vector.load %arg3[%c0_3, %c0_4] : memref<1x64xf32, #tpu.memory_space<vmem>>, vector<1x64xf32>
    %4 = vector.broadcast %3 : vector<1x64xf32> to vector<128x64xf32>
    %5 = arith.addf %2, %4 : vector<128x64xf32>
    %cst_5 = arith.constant 0.000000e+00 : f32
    %6 = vector.broadcast %cst_5 : f32 to vector<128x64xf32>
    %7 = arith.maximumf %5, %6 : vector<128x64xf32>
    %c0_6 = arith.constant 0 : index
    %c0_7 = arith.constant 0 : index
    %8 = vector.load %arg4[%c0_6, %c0_7] : memref<64x128xf32, #tpu.memory_space<vmem>>, vector<64x128xf32>
    %cst_8 = arith.constant dense<0.000000e+00> : vector<128x128xf32>
    %9 = tpu.matmul %7, %8, %cst_8 {dimension_numbers = #tpu.dot_dimension_numbers<[1], [0], [0], [1], [0, 0, 1, 1], [], []>} : vector<128x64xf32>, vector<64x128xf32>, vector<128x128xf32> -> vector<128x128xf32>
    %c0_9 = arith.constant 0 : index
    %c0_10 = arith.constant 0 : index
    %10 = vector.load %arg5[%c0_9, %c0_10] : memref<1x128xf32, #tpu.memory_space<vmem>>, vector<1x128xf32>
    %11 = vector.broadcast %10 : vector<1x128xf32> to vector<128x128xf32>
    %12 = arith.addf %9, %11 : vector<128x128xf32>
    %c0_11 = arith.constant 0 : index
    %c0_12 = arith.constant 0 : index
    %13 = vector.load %arg6[%c0_11, %c0_12] : memref<128x128xf32, #tpu.memory_space<vmem>>, vector<128x128xf32>
    tpu.vector_store %arg6[%c0_11, %c0_12], %12 {strides = array<i32>} : memref<128x128xf32, #tpu.memory_space<vmem>>, vector<128x128xf32>,
    return
  }
  func.func @transform_0(%arg0: i32) -> (i32, i32) {
    %c0_i32 = arith.constant 0 : i32
    %c0_i32_0 = arith.constant 0 : i32
    return %arg0, %c0_i32 : i32, i32
  }
  func.func @transform_1(%arg0: i32) -> (i32, i32) {
    %c0_i32 = arith.constant 0 : i32
    %c0_i32_0 = arith.constant 0 : i32
    %c0_i32_1 = arith.constant 0 : i32
    return %c0_i32, %c0_i32_0 : i32, i32
  }
  func.func @transform_2(%arg0: i32) -> (i32, i32) {
    %c0_i32 = arith.constant 0 : i32
    %c0_i32_0 = arith.constant 0 : i32
    %c0_i32_1 = arith.constant 0 : i32
    return %c0_i32, %c0_i32_0 : i32, i32
  }
  func.func @transform_3(%arg0: i32) -> (i32, i32) {
    %c0_i32 = arith.constant 0 : i32
    %c0_i32_0 = arith.constant 0 : i32
    %c0_i32_1 = arith.constant 0 : i32
    return %c0_i32, %c0_i32_0 : i32, i32
  }
  func.func @transform_4(%arg0: i32) -> (i32, i32) {
    %c0_i32 = arith.constant 0 : i32
    %c0_i32_0 = arith.constant 0 : i32
    %c0_i32_1 = arith.constant 0 : i32
    return %c0_i32, %c0_i32_0 : i32, i32
  }
  func.func @transform_5(%arg0: i32) -> (i32, i32) {
    %c0_i32 = arith.constant 0 : i32
    %c0_i32_0 = arith.constant 0 : i32
    return %arg0, %c0_i32 : i32, i32
  }
}

</mosaic_0001>

<llo_original>
// kernel: mlp_forward.1
$region0: #{mlp_forward.1}
  #allocation0 [shape = 'u32[]', space=smem, size = 0x4, offset = 0x4, fixed_abs, tag = 'smem constant byte address 0x4 - core index']
  #allocation1 [shape = 'u32[144,128]{1,0:T(1,128)}', space=vmem, size = 0x12000, scoped, tag = 'internal scratch']
  %s0 = inlined_call_operand.vmem [shape: f32[256,32], index: 0, kind: input, shape index: {}]
  %s1 = inlined_call_operand.vmem [shape: f32[32,64], index: 1, kind: input, shape index: {}]
  %s2 = inlined_call_operand.vmem [shape: f32[1,64], index: 2, kind: input, shape index: {}]
  %s3 = inlined_call_operand.vmem [shape: f32[64,128], index: 3, kind: input, shape index: {}]
  %s4 = inlined_call_operand.vmem [shape: f32[1,128], index: 4, kind: input, shape index: {}]
  %s5 = inlined_call_operand.vmem [shape: f32[256,128], index: 5, kind: output, shape index: {}]
  %s6 = sld [smem:[#allocation0]]
  $region53: #{mlp_forward.1} parent=0
    _
  %s8 = ssub.s32 1, %s6
  %s9 = scalar_select 0, %s8, %s6
  loop: start=0, step=1, limit=4
  $region2: #{mlp_forward.1} parent=0 // loop_pre_header
    _
  $region3: #{mlp_forward.1} parent=0 // loop_header
    %s11 = sphi 0, %s15
    %p12 = scmp.ge.s32.totalorder %s11, 4
    %s21 = sphi 0, %s23
    %s24 = sphi 0, %s21
    %s25 = sphi 0, %s24
    %s41 = sphi 0, %s25
    %s45 = sphi 0, %s45
    %s47 = sphi 0, %s45
    %s48 = sphi 0, %s47
    %s62 = sphi 0, %s48
    %s66 = sphi 0, %s66
    %s68 = sphi 0, %s66
    %s69 = sphi 0, %s68
    %s83 = sphi 0, %s69
    %s87 = sphi 0, %s87
    %s89 = sphi 0, %s87
    %s90 = sphi 0, %s89
    %s104 = sphi 0, %s90
    %s108 = sphi 0, %s108
    %s110 = sphi 0, %s108
    %s111 = sphi 0, %s110
    %s125 = sphi 0, %s111
    %s131 = sphi 0, %s133
    %s134 = sphi 0, %s131
    %s135 = sphi 0, %s134
    %s151 = sphi 0, %s135
  $region4: #{mlp_forward.1} parent=0 // loop_header_branch
    %14 = sbr.rel (%p12) target = $region8
  $region5: #{mlp_forward.1} parent=0 // loop_body
    %s16 = ssub.s32 %s11, 1
    %s17 = ssub.s32 %s11, 2
    %s18 = sadd.s32 %s11, 1
    %s19 = ssub.s32 %s11, %s18
    %p20 = scmp.eq.s32.totalorder %s19, 0
    %s22 = sadd.s32 %s21, 1
    %s23 = scalar_select %p20, %s21, %s22
    %p26 = pneg %p20
    %p27 = scmp.eq.s32.totalorder %s11, 1
    %p28 = por %p26, %p27
    %p29 = scmp.ne.s32.totalorder %s21, %s24
    %p30 = scmp.eq.s32.totalorder %s11, 0
    %p31 = por %p29, %p30
    %p32 = scmp.ne.s32.totalorder %s21, %s24
    %p33 = scmp.eq.s32.totalorder %s16, 1
    %p34 = por %p32, %p33
    %p35 = scmp.ne.s32.totalorder %s24, %s25
    %p36 = scmp.eq.s32.totalorder %s16, 0
    %p37 = por %p35, %p36
    %p38 = scmp.ne.s32.totalorder %s24, %s25
    %p39 = scmp.eq.s32.totalorder %s17, 1
    %p40 = por %p38, %p39
    %p42 = scmp.ne.s32.totalorder %s25, %s41
    %p43 = scmp.eq.s32.totalorder %s17, 0
    %p44 = por %p42, %p43
    %s46 = sadd.s32 %s45, 1
    %p49 = scmp.eq.s32.totalorder %s11, 1
    %p50 = scmp.ne.s32.totalorder %s45, %s47
    %p51 = scmp.eq.s32.totalorder %s11, 0
    %p52 = por %p50, %p51
    %p53 = scmp.ne.s32.totalorder %s45, %s47
    %p54 = scmp.eq.s32.totalorder %s16, 1
    %p55 = por %p53, %p54
    %p56 = scmp.ne.s32.totalorder %s47, %s48
    %p57 = scmp.eq.s32.totalorder %s16, 0
    %p58 = por %p56, %p57
    %p59 = scmp.ne.s32.totalorder %s47, %s48
    %p60 = scmp.eq.s32.totalorder %s17, 1
    %p61 = por %p59, %p60
    %p63 = scmp.ne.s32.totalorder %s48, %s62
    %p64 = scmp.eq.s32.totalorder %s17, 0
    %p65 = por %p63, %p64
    %s67 = sadd.s32 %s66, 1
    %p70 = scmp.eq.s32.totalorder %s11, 1
    %p71 = scmp.ne.s32.totalorder %s66, %s68
    %p72 = scmp.eq.s32.totalorder %s11, 0
    %p73 = por %p71, %p72
    %p74 = scmp.ne.s32.totalorder %s66, %s68
    %p75 = scmp.eq.s32.totalorder %s16, 1
    %p76 = por %p74, %p75
    %p77 = scmp.ne.s32.totalorder %s68, %s69
    %p78 = scmp.eq.s32.totalorder %s16, 0
    %p79 = por %p77, %p78
    %p80 = scmp.ne.s32.totalorder %s68, %s69
    %p81 = scmp.eq.s32.totalorder %s17, 1
    %p82 = por %p80, %p81
    %p84 = scmp.ne.s32.totalorder %s69, %s83
    %p85 = scmp.eq.s32.totalorder %s17, 0
    %p86 = por %p84, %p85
    %s88 = sadd.s32 %s87, 1
    %p91 = scmp.eq.s32.totalorder %s11, 1
    %p92 = scmp.ne.s32.totalorder %s87, %s89
    %p93 = scmp.eq.s32.totalorder %s11, 0
    %p94 = por %p92, %p93
    %p95 = scmp.ne.s32.totalorder %s87, %s89
    %p96 = scmp.eq.s32.totalorder %s16, 1
    %p97 = por %p95, %p96
    %p98 = scmp.ne.s32.totalorder %s89, %s90
    %p99 = scmp.eq.s32.totalorder %s16, 0
    %p100 = por %p98, %p99
    %p101 = scmp.ne.s32.totalorder %s89, %s90
    %p102 = scmp.eq.s32.totalorder %s17, 1
    %p103 = por %p101, %p102
    %p105 = scmp.ne.s32.totalorder %s90, %s104
    %p106 = scmp.eq.s32.totalorder %s17, 0
    %p107 = por %p105, %p106
    %s109 = sadd.s32 %s108, 1
    %p112 = scmp.eq.s32.totalorder %s11, 1
    %p113 = scmp.ne.s32.totalorder %s108, %s110
    %p114 = scmp.eq.s32.totalorder %s11, 0
    %p115 = por %p113, %p114
    %p116 = scmp.ne.s32.totalorder %s108, %s110
    %p117 = scmp.eq.s32.totalorder %s16, 1
    %p118 = por %p116, %p117
    %p119 = scmp.ne.s32.totalorder %s110, %s111
    %p120 = scmp.eq.s32.totalorder %s16, 0
    %p121 = por %p119, %p120
    %p122 = scmp.ne.s32.totalorder %s110, %s111
    %p123 = scmp.eq.s32.totalorder %s17, 1
    %p124 = por %p122, %p123
    %p126 = scmp.ne.s32.totalorder %s111, %s125
    %p127 = scmp.eq.s32.totalorder %s17, 0
    %p128 = por %p126, %p127
    %s129 = ssub.s32 %s11, %s18
    %p130 = scmp.eq.s32.totalorder %s129, 0
    %s132 = sadd.s32 %s131, 1
    %s133 = scalar_select %p130, %s131, %s132
    %p136 = pneg %p130
    %p137 = scmp.eq.s32.totalorder %s11, 1
    %p138 = por %p136, %p137
    %p139 = scmp.ne.s32.totalorder %s131, %s134
    %p140 = scmp.eq.s32.totalorder %s11, 0
    %p141 = por %p139, %p140
    %p142 = scmp.ne.s32.totalorder %s131, %s134
    %p143 = scmp.eq.s32.totalorder %s16, 1
    %p144 = por %p142, %p143
    %p145 = scmp.ne.s32.totalorder %s134, %s135
    %p146 = scmp.eq.s32.totalorder %s16, 0
    %p147 = por %p145, %p146
    %p148 = scmp.ne.s32.totalorder %s134, %s135
    %p149 = scmp.eq.s32.totalorder %s17, 1
    %p150 = por %p148, %p149
    %p152 = scmp.ne.s32.totalorder %s135, %s151
    %p153 = scmp.eq.s32.totalorder %s17, 0
    %p154 = por %p152, %p153
    %p155 = scmp.le.s32.totalorder 1, %s11
    %p156 = scmp.lt.s32.totalorder %s11, 3
    %p157 = pnand %p155, %p156
    %p158 = pneg %p157
    // Predicated region
    $region9: #{mlp_forward.1} parent=5 // pred_check
      _
    $region10: #{mlp_forward.1} parent=5 // pred_check_branch
      %160 = sbr.rel (%p157) target = $region12
    $region11: #{mlp_forward.1} parent=5 // pred_region
      %s161 = ssub.s32 %s11, 1
      // Predicated region
      $region13: #{mlp_forward.1} parent=11 // pred_check
        %p162 = pneg %p58
      $region14: #{mlp_forward.1} parent=11 // pred_check_branch
        %164 = sbr.rel (%p162) target = $region16
      $region15: #{mlp_forward.1} parent=11 // pred_region
        _
      $region16: #{mlp_forward.1} parent=11 // pred_fallthru
        _
      // Predicated region
      $region17: #{mlp_forward.1} parent=11 // pred_check
        %p165 = pneg %p79
      $region18: #{mlp_forward.1} parent=11 // pred_check_branch
        %167 = sbr.rel (%p165) target = $region20
      $region19: #{mlp_forward.1} parent=11 // pred_region
        _
      $region20: #{mlp_forward.1} parent=11 // pred_fallthru
        _
      // Predicated region
      $region21: #{mlp_forward.1} parent=11 // pred_check
        %p168 = pneg %p100
      $region22: #{mlp_forward.1} parent=11 // pred_check_branch
        %170 = sbr.rel (%p168) target = $region24
      $region23: #{mlp_forward.1} parent=11 // pred_region
        _
      $region24: #{mlp_forward.1} parent=11 // pred_fallthru
        _
      // Predicated region
      $region25: #{mlp_forward.1} parent=11 // pred_check
        %p171 = pneg %p121
      $region26: #{mlp_forward.1} parent=11 // pred_check_branch
        %173 = sbr.rel (%p171) target = $region28
      $region27: #{mlp_forward.1} parent=11 // pred_region
        _
      $region28: #{mlp_forward.1} parent=11 // pred_fallthru
        _
    $region12: #{mlp_forward.1} parent=5 // pred_fallthru
      _
    %p174 = scmp.lt.s32.totalorder %s11, 2
    // Predicated region
    $region29: #{mlp_forward.1} parent=5 // pred_check
      %p175 = pneg %p174
    $region30: #{mlp_forward.1} parent=5 // pred_check_branch
      %177 = sbr.rel (%p175) target = $region32
    $region31: #{mlp_forward.1} parent=5 // pred_region
      // Predicated region
      $region33: #{mlp_forward.1} parent=31 // pred_check
        %p178 = pneg %p31
      $region34: #{mlp_forward.1} parent=31 // pred_check_branch
        %180 = sbr.rel (%p178) target = $region36
      $region35: #{mlp_forward.1} parent=31 // pred_region
        %s181 = smul.u32 16, %s11
        %p182 = scmp.lt.s32.totalorder %s181, 31
        %s183 = scalar_select %p182, %s181, 31
        %s184 = smul.addr %s183, 8
        %s185 = scalar_lea.vmem %s0, %s184
        %s186 = smul.u32 16, %s11
      $region36: #{mlp_forward.1} parent=31 // pred_fallthru
        _
    $region32: #{mlp_forward.1} parent=5 // pred_fallthru
      _
    %p187 = scmp.le.s32.totalorder 1, %s11
    %p188 = scmp.lt.s32.totalorder %s11, 3
    %p189 = pnand %p187, %p188
    %p190 = pneg %p189
    // Predicated region
    $region37: #{mlp_forward.1} parent=5 // pred_check
      _
    $region38: #{mlp_forward.1} parent=5 // pred_check_branch
      %192 = sbr.rel (%p189) target = $region40
    $region39: #{mlp_forward.1} parent=5 // pred_region
      %s193 = ssub.s32 %s11, 1
      %s194 = smul.u32 16, %s16
      %p195 = scmp.lt.s32.totalorder %s194, 31
      %s196 = scalar_select %p195, %s194, 31
      %s197 = smul.addr %s196, 8
      %s198 = scalar_lea.vmem %s0, %s197
      %p199 = pneg %p37
      %p200 = pneg %p34
      %p201 = pneg %p58
      %p202 = pneg %p55
      %p203 = pneg %p79
      %p204 = pneg %p76
      %p205 = pneg %p100
      %p206 = pneg %p97
      %p207 = pneg %p121
      %p208 = pneg %p118
      %p209 = pneg %p147
      %p210 = pneg %p144
      %s211 = smul.u32 16, %s16
      %p212 = scmp.lt.s32.totalorder %s211, 31
      %s213 = scalar_select %p212, %s211, 31
      %s214 = smul.addr %s213, 8
      %s215 = scalar_lea.vmem %s5, %s214
      %s216 = smul.u32 16, %s16
      %p217 = scmp.lt.s32.totalorder %s216, 31
      %s218 = scalar_select %p217, %s216, 31
      %s219 = smul.addr %s218, 8
      %s220 = scalar_lea.vmem %s0, %s219
      %s221 = smul.u32 16, %s16
      %s222 = smul.u32 16, %s16
      %p223 = scmp.lt.s32.totalorder %s222, 31
      %s224 = scalar_select %p223, %s222, 31
      %s225 = smul.addr %s224, 8
      %s226 = scalar_lea.vmem %s5, %s225
      %s227 = smul.u32 16, %s16
      %v228 = vld [vmem:[%s220] sm:$0xff]
      %v229 = vld [vmem:[%s220 + $0x8] sm:$0xff]
      %v230 = vld [vmem:[%s220 + $0x10] sm:$0xff]
      %v231 = vld [vmem:[%s220 + $0x18] sm:$0xff]
      %v232 = vld [vmem:[%s220 + $0x20] sm:$0xff]
      %v233 = vld [vmem:[%s220 + $0x28] sm:$0xff]
      %v234 = vld [vmem:[%s220 + $0x30] sm:$0xff]
      %v235 = vld [vmem:[%s220 + $0x38] sm:$0xff]
      %v236 = vld [vmem:[%s220 + $0x40] sm:$0xff]
      %v237 = vld [vmem:[%s220 + $0x48] sm:$0xff]
      %v238 = vld [vmem:[%s220 + $0x50] sm:$0xff]
      %v239 = vld [vmem:[%s220 + $0x58] sm:$0xff]
      %v240 = vld [vmem:[%s220 + $0x60] sm:$0xff]
      %v241 = vld [vmem:[%s220 + $0x68] sm:$0xff]
      %v242 = vld [vmem:[%s220 + $0x70] sm:$0xff]
      %v243 = vld [vmem:[%s220 + $0x78] sm:$0xff]
      %v244 = vld [vmem:[%s1] sm:$0xff]
      %v245 = vld [vmem:[%s1 + $0x8] sm:$0xff]
      %v246 = vld [vmem:[%s1 + $0x10] sm:$0xff]
      %v247 = vld [vmem:[%s1 + $0x18] sm:$0xff]
      %v248 = vld [vmem:[%s2] sm:$0x1]
      %v250 = vlaneseq
      %v251 = vshrl.u32 %v250, 7
      %v252 = vsub.s32 0, %v251
      %v253 = vrot.slane %v248, %v252
      %vm255 = vcmask 261120
      %v257 = vsel %vm255, %v228, 0
      %v260 = vsel %vm255, %v229, 0
      %v263 = vsel %vm255, %v230, 0
      %v266 = vsel %vm255, %v231, 0
      %v269 = vsel %vm255, %v232, 0
      %v272 = vsel %vm255, %v233, 0
      %v275 = vsel %vm255, %v234, 0
      %v278 = vsel %vm255, %v235, 0
      %v281 = vsel %vm255, %v236, 0
      %v284 = vsel %vm255, %v237, 0
      %v287 = vsel %vm255, %v238, 0
      %v290 = vsel %vm255, %v239, 0
      %v293 = vsel %vm255, %v240, 0
      %v296 = vsel %vm255, %v241, 0
      %v299 = vsel %vm255, %v242, 0
      %v302 = vsel %vm255, %v243, 0
      %304 = vmatprep.subr.mxu0 0.0
      %305 = vmatpush1.msra.mxu0 0.0
      %306 = vmatprep.subr.mxu0 0.0
      %307 = vmatpush1.msra.mxu0 0.0
      %308 = vmatprep.subr.mxu0 0.0
      %309 = vmatpush1.msra.mxu0 0.0
      %310 = vmatprep.subr.mxu0 0.0
      %311 = vmatpush1.msra.mxu0 0.0
      %312 = vmatprep.subr.mxu0 0.0
      %313 = vmatpush1.msra.mxu0 0.0
      %314 = vmatprep.subr.mxu0 0.0
      %315 = vmatpush1.msra.mxu0 0.0
      %316 = vmatprep.subr.mxu0 0.0
      %317 = vmatpush1.msra.mxu0 0.0
      %318 = vmatprep.subr.mxu0 0.0
      %319 = vmatpush1.msra.mxu0 0.0
      %320 = vmatprep.subr.mxu0 0.0
      %321 = vmatpush1.msra.mxu0 0.0
      %322 = vmatprep.subr.mxu0 0.0
      %323 = vmatpush1.msra.mxu0 0.0
      %324 = vmatprep.subr.mxu0 0.0
      %325 = vmatpush1.msra.mxu0 0.0
      %326 = vmatprep.subr.mxu0 0.0
      %327 = vmatpush1.msra.mxu0 0.0
      %328 = vmatprep.subr.mxu0 0.0
      %329 = vmatpush1.msra.mxu0 %v247
      %330 = vmatprep.subr.mxu0 0.0
      %331 = vmatpush1.msra.mxu0 %v246
      %332 = vmatprep.subr.mxu0 0.0
      %333 = vmatpush1.msra.mxu0 %v245
      %334 = vmatprep.subr.mxu0 0.0
      %335 = vmatpush1.msra.mxu0 %v244
      %336 = vmatprep.subr.mxu0 0.0
      %337 = vmatpush2.msra.mxu0 0.0
      %338 = vmatprep.subr.mxu0 0.0
      %339 = vmatpush2.msra.mxu0 0.0
      %340 = vmatprep.subr.mxu0 0.0
      %341 = vmatpush2.msra.mxu0 0.0
      %342 = vmatprep.subr.mxu0 0.0
      %343 = vmatpush2.msra.mxu0 0.0
      %344 = vmatprep.subr.mxu0 0.0
      %345 = vmatpush2.msra.mxu0 0.0
      %346 = vmatprep.subr.mxu0 0.0
      %347 = vmatpush2.msra.mxu0 0.0
      %348 = vmatprep.subr.mxu0 0.0
      %349 = vmatpush2.msra.mxu0 0.0
      %350 = vmatprep.subr.mxu0 0.0
      %351 = vmatpush2.msra.mxu0 0.0
      %352 = vmatprep.subr.mxu0 0.0
      %353 = vmatpush2.msra.mxu0 0.0
      %354 = vmatprep.subr.mxu0 0.0
      %355 = vmatpush2.msra.mxu0 0.0
      %356 = vmatprep.subr.mxu0 0.0
      %357 = vmatpush2.msra.mxu0 0.0
      %358 = vmatprep.subr.mxu0 0.0
      %359 = vmatpush2.msra.mxu0 0.0
      %360 = vmatprep.subr.mxu0 0.0
      %361 = vmatpush2.msra.mxu0 0.0
      %362 = vmatprep.subr.mxu0 0.0
      %363 = vmatpush2.msra.mxu0 0.0
      %364 = vmatprep.subr.mxu0 0.0
      %365 = vmatpush2.msra.mxu0 0.0
      %366 = vmatprep.subr.mxu0 0.0
      %367 = vmatpush2.msra.mxu0 0.0
      %368 = vmatprep.mubr.f32.mxu0 0.0
      %369 = vmatmul.mubr.f32.gmra.mxu0 %v257
      %v370 = vpop.f32.mrf.mxu0
      %v371 = vadd.f32 %v253, %v370
      %v372 = vpop.f32.mrf.mxu0
      %373 = vmatprep.mubr.f32.mxu0 0.0
      %374 = vmatmul.mubr.f32.gmra.mxu0 %v260
      %v375 = vpop.f32.mrf.mxu0
      %v376 = vadd.f32 %v253, %v375
      %v377 = vpop.f32.mrf.mxu0
      %378 = vmatprep.mubr.f32.mxu0 0.0
      %379 = vmatmul.mubr.f32.gmra.mxu0 %v263
      %v380 = vpop.f32.mrf.mxu0
      %v381 = vadd.f32 %v253, %v380
      %v382 = vpop.f32.mrf.mxu0
      %383 = vmatprep.mubr.f32.mxu0 0.0
      %384 = vmatmul.mubr.f32.gmra.mxu0 %v266
      %v385 = vpop.f32.mrf.mxu0
      %v386 = vadd.f32 %v253, %v385
      %v387 = vpop.f32.mrf.mxu0
      %388 = vmatprep.mubr.f32.mxu0 0.0
      %389 = vmatmul.mubr.f32.gmra.mxu0 %v269
      %v390 = vpop.f32.mrf.mxu0
      %v391 = vadd.f32 %v253, %v390
      %v392 = vpop.f32.mrf.mxu0
      %393 = vmatprep.mubr.f32.mxu0 0.0
      %394 = vmatmul.mubr.f32.gmra.mxu0 %v272
      %v395 = vpop.f32.mrf.mxu0
      %v396 = vadd.f32 %v253, %v395
      %v397 = vpop.f32.mrf.mxu0
      %398 = vmatprep.mubr.f32.mxu0 0.0
      %399 = vmatmul.mubr.f32.gmra.mxu0 %v275
      %v400 = vpop.f32.mrf.mxu0
      %v401 = vadd.f32 %v253, %v400
      %v402 = vpop.f32.mrf.mxu0
      %403 = vmatprep.mubr.f32.mxu0 0.0
      %404 = vmatmul.mubr.f32.gmra.mxu0 %v278
      %v405 = vpop.f32.mrf.mxu0
      %v406 = vadd.f32 %v253, %v405
      %v407 = vpop.f32.mrf.mxu0
      %408 = vmatprep.mubr.f32.mxu0 0.0
      %409 = vmatmul.mubr.f32.gmra.mxu0 %v281
      %v410 = vpop.f32.mrf.mxu0
      %v411 = vadd.f32 %v253, %v410
      %v412 = vpop.f32.mrf.mxu0
      %413 = vmatprep.mubr.f32.mxu0 0.0
      %414 = vmatmul.mubr.f32.gmra.mxu0 %v284
      %v415 = vpop.f32.mrf.mxu0
      %v416 = vadd.f32 %v253, %v415
      %v417 = vpop.f32.mrf.mxu0
      %418 = vmatprep.mubr.f32.mxu0 0.0
      %419 = vmatmul.mubr.f32.gmra.mxu0 %v287
      %v420 = vpop.f32.mrf.mxu0
      %v421 = vadd.f32 %v253, %v420
      %v422 = vpop.f32.mrf.mxu0
      %423 = vmatprep.mubr.f32.mxu0 0.0
      %424 = vmatmul.mubr.f32.gmra.mxu0 %v290
      %v425 = vpop.f32.mrf.mxu0
      %v426 = vadd.f32 %v253, %v425
      %v427 = vpop.f32.mrf.mxu0
      %428 = vmatprep.mubr.f32.mxu0 0.0
      %429 = vmatmul.mubr.f32.gmra.mxu0 %v293
      %v430 = vpop.f32.mrf.mxu0
      %v431 = vadd.f32 %v253, %v430
      %v432 = vpop.f32.mrf.mxu0
      %433 = vmatprep.mubr.f32.mxu0 0.0
      %434 = vmatmul.mubr.f32.gmra.mxu0 %v296
      %v435 = vpop.f32.mrf.mxu0
      %v436 = vadd.f32 %v253, %v435
      %v437 = vpop.f32.mrf.mxu0
      %438 = vmatprep.mubr.f32.mxu0 0.0
      %439 = vmatmul.mubr.f32.gmra.mxu0 %v299
      %v440 = vpop.f32.mrf.mxu0
      %v441 = vadd.f32 %v253, %v440
      %v442 = vpop.f32.mrf.mxu0
      %443 = vmatprep.mubr.f32.mxu0 0.0
      %444 = vmatmul.mubr.f32.gmra.mxu0 %v302
      %v445 = vpop.f32.mrf.mxu0
      %v446 = vadd.f32 %v253, %v445
      %v447 = vpop.f32.mrf.mxu0
      %448 = vdwg.mxu0
      %v449 = vmax.f32 %v371, 0.0
      %v450 = vmax.f32 %v376, 0.0
      %v451 = vmax.f32 %v381, 0.0
      %v452 = vmax.f32 %v386, 0.0
      %v453 = vmax.f32 %v391, 0.0
      %v454 = vmax.f32 %v396, 0.0
      %v455 = vmax.f32 %v401, 0.0
      %v456 = vmax.f32 %v406, 0.0
      %v457 = vmax.f32 %v411, 0.0
      %v458 = vmax.f32 %v416, 0.0
      %v459 = vmax.f32 %v421, 0.0
      %v460 = vmax.f32 %v426, 0.0
      %v461 = vmax.f32 %v431, 0.0
      %v462 = vmax.f32 %v436, 0.0
      %v463 = vmax.f32 %v441, 0.0
      %v464 = vmax.f32 %v446, 0.0
      %v465 = vld [vmem:[%s3] sm:$0xff]
      %v466 = vld [vmem:[%s3 + $0x8] sm:$0xff]
      %v467 = vld [vmem:[%s3 + $0x10] sm:$0xff]
      %v468 = vld [vmem:[%s3 + $0x18] sm:$0xff]
      %v469 = vld [vmem:[%s3 + $0x20] sm:$0xff]
      %v470 = vld [vmem:[%s3 + $0x28] sm:$0xff]
      %v471 = vld [vmem:[%s3 + $0x30] sm:$0xff]
      %v472 = vld [vmem:[%s3 + $0x38] sm:$0xff]
      %v473 = vld [vmem:[%s4] sm:$0x1]
      %v475 = vlaneseq
      %v476 = vshrl.u32 %v475, 7
      %v477 = vsub.s32 0, %v476
      %v478 = vrot.slane %v473, %v477
      %vm480 = vcmask 523264
      %v482 = vsel %vm480, %v449, 0
      %v485 = vsel %vm480, %v450, 0
      %v488 = vsel %vm480, %v451, 0
      %v491 = vsel %vm480, %v452, 0
      %v494 = vsel %vm480, %v453, 0
      %v497 = vsel %vm480, %v454, 0
      %v500 = vsel %vm480, %v455, 0
      %v503 = vsel %vm480, %v456, 0
      %v506 = vsel %vm480, %v457, 0
      %v509 = vsel %vm480, %v458, 0
      %v512 = vsel %vm480, %v459, 0
      %v515 = vsel %vm480, %v460, 0
      %v518 = vsel %vm480, %v461, 0
      %v521 = vsel %vm480, %v462, 0
      %v524 = vsel %vm480, %v463, 0
      %v527 = vsel %vm480, %v464, 0
      %529 = vmatprep.subr.mxu0 0.0
      %530 = vmatpush1.msra.mxu0 0.0
      %531 = vmatprep.subr.mxu0 0.0
      %532 = vmatpush1.msra.mxu0 0.0
      %533 = vmatprep.subr.mxu0 0.0
      %534 = vmatpush1.msra.mxu0 0.0
      %535 = vmatprep.subr.mxu0 0.0
      %536 = vmatpush1.msra.mxu0 0.0
      %537 = vmatprep.subr.mxu0 0.0
      %538 = vmatpush1.msra.mxu0 0.0
      %539 = vmatprep.subr.mxu0 0.0
      %540 = vmatpush1.msra.mxu0 0.0
      %541 = vmatprep.subr.mxu0 0.0
      %542 = vmatpush1.msra.mxu0 0.0
      %543 = vmatprep.subr.mxu0 0.0
      %544 = vmatpush1.msra.mxu0 0.0
      %545 = vmatprep.subr.mxu0 0.0
      %546 = vmatpush1.msra.mxu0 %v472
      %547 = vmatprep.subr.mxu0 0.0
      %548 = vmatpush1.msra.mxu0 %v471
      %549 = vmatprep.subr.mxu0 0.0
      %550 = vmatpush1.msra.mxu0 %v470
      %551 = vmatprep.subr.mxu0 0.0
      %552 = vmatpush1.msra.mxu0 %v469
      %553 = vmatprep.subr.mxu0 0.0
      %554 = vmatpush1.msra.mxu0 %v468
      %555 = vmatprep.subr.mxu0 0.0
      %556 = vmatpush1.msra.mxu0 %v467
      %557 = vmatprep.subr.mxu0 0.0
      %558 = vmatpush1.msra.mxu0 %v466
      %559 = vmatprep.subr.mxu0 0.0
      %560 = vmatpush1.msra.mxu0 %v465
      %561 = vmatprep.subr.mxu0 0.0
      %562 = vmatpush2.msra.mxu0 0.0
      %563 = vmatprep.subr.mxu0 0.0
      %564 = vmatpush2.msra.mxu0 0.0
      %565 = vmatprep.subr.mxu0 0.0
      %566 = vmatpush2.msra.mxu0 0.0
      %567 = vmatprep.subr.mxu0 0.0
      %568 = vmatpush2.msra.mxu0 0.0
      %569 = vmatprep.subr.mxu0 0.0
      %570 = vmatpush2.msra.mxu0 0.0
      %571 = vmatprep.subr.mxu0 0.0
      %572 = vmatpush2.msra.mxu0 0.0
      %573 = vmatprep.subr.mxu0 0.0
      %574 = vmatpush2.msra.mxu0 0.0
      %575 = vmatprep.subr.mxu0 0.0
      %576 = vmatpush2.msra.mxu0 0.0
      %577 = vmatprep.subr.mxu0 0.0
      %578 = vmatpush2.msra.mxu0 0.0
      %579 = vmatprep.subr.mxu0 0.0
      %580 = vmatpush2.msra.mxu0 0.0
      %581 = vmatprep.subr.mxu0 0.0
      %582 = vmatpush2.msra.mxu0 0.0
      %583 = vmatprep.subr.mxu0 0.0
      %584 = vmatpush2.msra.mxu0 0.0
      %585 = vmatprep.subr.mxu0 0.0
      %586 = vmatpush2.msra.mxu0 0.0
      %587 = vmatprep.subr.mxu0 0.0
      %588 = vmatpush2.msra.mxu0 0.0
      %589 = vmatprep.subr.mxu0 0.0
      %590 = vmatpush2.msra.mxu0 0.0
      %591 = vmatprep.subr.mxu0 0.0
      %592 = vmatpush2.msra.mxu0 0.0
      %593 = vmatprep.mubr.f32.mxu0 0.0
      %594 = vmatmul.mubr.f32.gmra.mxu0 %v482
      %v595 = vpop.f32.mrf.mxu0
      %v596 = vadd.f32 %v478, %v595
      %v597 = vpop.f32.mrf.mxu0
      %598 = vmatprep.mubr.f32.mxu0 0.0
      %599 = vmatmul.mubr.f32.gmra.mxu0 %v485
      %v600 = vpop.f32.mrf.mxu0
      %v601 = vadd.f32 %v478, %v600
      %v602 = vpop.f32.mrf.mxu0
      %603 = vmatprep.mubr.f32.mxu0 0.0
      %604 = vmatmul.mubr.f32.gmra.mxu0 %v488
      %v605 = vpop.f32.mrf.mxu0
      %v606 = vadd.f32 %v478, %v605
      %v607 = vpop.f32.mrf.mxu0
      %608 = vmatprep.mubr.f32.mxu0 0.0
      %609 = vmatmul.mubr.f32.gmra.mxu0 %v491
      %v610 = vpop.f32.mrf.mxu0
      %v611 = vadd.f32 %v478, %v610
      %v612 = vpop.f32.mrf.mxu0
      %613 = vmatprep.mubr.f32.mxu0 0.0
      %614 = vmatmul.mubr.f32.gmra.mxu0 %v494
      %v615 = vpop.f32.mrf.mxu0
      %v616 = vadd.f32 %v478, %v615
      %v617 = vpop.f32.mrf.mxu0
      %618 = vmatprep.mubr.f32.mxu0 0.0
      %619 = vmatmul.mubr.f32.gmra.mxu0 %v497
      %v620 = vpop.f32.mrf.mxu0
      %v621 = vadd.f32 %v478, %v620
      %v622 = vpop.f32.mrf.mxu0
      %623 = vmatprep.mubr.f32.mxu0 0.0
      %624 = vmatmul.mubr.f32.gmra.mxu0 %v500
      %v625 = vpop.f32.mrf.mxu0
      %v626 = vadd.f32 %v478, %v625
      %v627 = vpop.f32.mrf.mxu0
      %628 = vmatprep.mubr.f32.mxu0 0.0
      %629 = vmatmul.mubr.f32.gmra.mxu0 %v503
      %v630 = vpop.f32.mrf.mxu0
      %v631 = vadd.f32 %v478, %v630
      %v632 = vpop.f32.mrf.mxu0
      %633 = vmatprep.mubr.f32.mxu0 0.0
      %634 = vmatmul.mubr.f32.gmra.mxu0 %v506
      %v635 = vpop.f32.mrf.mxu0
      %v636 = vadd.f32 %v478, %v635
      %v637 = vpop.f32.mrf.mxu0
      %638 = vmatprep.mubr.f32.mxu0 0.0
      %639 = vmatmul.mubr.f32.gmra.mxu0 %v509
      %v640 = vpop.f32.mrf.mxu0
      %v641 = vadd.f32 %v478, %v640
      %v642 = vpop.f32.mrf.mxu0
      %643 = vmatprep.mubr.f32.mxu0 0.0
      %644 = vmatmul.mubr.f32.gmra.mxu0 %v512
      %v645 = vpop.f32.mrf.mxu0
      %v646 = vadd.f32 %v478, %v645
      %v647 = vpop.f32.mrf.mxu0
      %648 = vmatprep.mubr.f32.mxu0 0.0
      %649 = vmatmul.mubr.f32.gmra.mxu0 %v515
      %v650 = vpop.f32.mrf.mxu0
      %v651 = vadd.f32 %v478, %v650
      %v652 = vpop.f32.mrf.mxu0
      %653 = vmatprep.mubr.f32.mxu0 0.0
      %654 = vmatmul.mubr.f32.gmra.mxu0 %v518
      %v655 = vpop.f32.mrf.mxu0
      %v656 = vadd.f32 %v478, %v655
      %v657 = vpop.f32.mrf.mxu0
      %658 = vmatprep.mubr.f32.mxu0 0.0
      %659 = vmatmul.mubr.f32.gmra.mxu0 %v521
      %v660 = vpop.f32.mrf.mxu0
      %v661 = vadd.f32 %v478, %v660
      %v662 = vpop.f32.mrf.mxu0
      %663 = vmatprep.mubr.f32.mxu0 0.0
      %664 = vmatmul.mubr.f32.gmra.mxu0 %v524
      %v665 = vpop.f32.mrf.mxu0
      %v666 = vadd.f32 %v478, %v665
      %v667 = vpop.f32.mrf.mxu0
      %668 = vmatprep.mubr.f32.mxu0 0.0
      %669 = vmatmul.mubr.f32.gmra.mxu0 %v527
      %v670 = vpop.f32.mrf.mxu0
      %v671 = vadd.f32 %v478, %v670
      %v672 = vpop.f32.mrf.mxu0
      %673 = vdwg.mxu0
      %674 = vst [vmem:[%s226] sm:$0xff] %v596
      %675 = vst [vmem:[%s226 + $0x8] sm:$0xff] %v601
      %676 = vst [vmem:[%s226 + $0x10] sm:$0xff] %v606
      %677 = vst [vmem:[%s226 + $0x18] sm:$0xff] %v611
      %678 = vst [vmem:[%s226 + $0x20] sm:$0xff] %v616
      %679 = vst [vmem:[%s226 + $0x28] sm:$0xff] %v621
      %680 = vst [vmem:[%s226 + $0x30] sm:$0xff] %v626
      %681 = vst [vmem:[%s226 + $0x38] sm:$0xff] %v631
      %682 = vst [vmem:[%s226 + $0x40] sm:$0xff] %v636
      %683 = vst [vmem:[%s226 + $0x48] sm:$0xff] %v641
      %684 = vst [vmem:[%s226 + $0x50] sm:$0xff] %v646
      %685 = vst [vmem:[%s226 + $0x58] sm:$0xff] %v651
      %686 = vst [vmem:[%s226 + $0x60] sm:$0xff] %v656
      %687 = vst [vmem:[%s226 + $0x68] sm:$0xff] %v661
      %688 = vst [vmem:[%s226 + $0x70] sm:$0xff] %v666
      %689 = vst [vmem:[%s226 + $0x78] sm:$0xff] %v671
      %s690 = smul.u32 16, %s16
      %p691 = scmp.lt.s32.totalorder %s690, 31
      %s692 = scalar_select %p691, %s690, 31
      %s693 = smul.addr %s692, 8
      %s694 = scalar_lea.vmem %s5, %s693
      // Predicated region
      $region41: #{mlp_forward.1} parent=39 // pred_check
        %p695 = pneg %p144
      $region42: #{mlp_forward.1} parent=39 // pred_check_branch
        %697 = sbr.rel (%p695) target = $region44
      $region43: #{mlp_forward.1} parent=39 // pred_region
        %s698 = smul.u32 16, %s16
      $region44: #{mlp_forward.1} parent=39 // pred_fallthru
        _
    $region40: #{mlp_forward.1} parent=5 // pred_fallthru
      _
    %p699 = scmp.le.s32.totalorder 2, %s11
    // Predicated region
    $region45: #{mlp_forward.1} parent=5 // pred_check
      %p700 = pneg %p699
    $region46: #{mlp_forward.1} parent=5 // pred_check_branch
      %702 = sbr.rel (%p700) target = $region48
    $region47: #{mlp_forward.1} parent=5 // pred_region
      %s703 = ssub.s32 %s11, 2
      // Predicated region
      $region49: #{mlp_forward.1} parent=47 // pred_check
        %p704 = pneg %p150
      $region50: #{mlp_forward.1} parent=47 // pred_check_branch
        %706 = sbr.rel (%p704) target = $region52
      $region51: #{mlp_forward.1} parent=47 // pred_region
        %s707 = smul.u32 16, %s17
        %p708 = scmp.lt.s32.totalorder %s707, 31
        %s709 = scalar_select %p708, %s707, 31
        %s710 = smul.addr %s709, 8
        %s711 = scalar_lea.vmem %s5, %s710
      $region52: #{mlp_forward.1} parent=47 // pred_fallthru
        _
    $region48: #{mlp_forward.1} parent=5 // pred_fallthru
      _
  $region6: #{mlp_forward.1} parent=0 // loop_footer
    %s15 = sadd.s32 1, %s11
  $region7: #{mlp_forward.1} parent=0 // loop_footer_branch
    %10 = sbr.rel target = $region3
  $region8: #{mlp_forward.1} parent=0 // loop_exit
    _

</llo_original>
